<compile_context>
chip_gen: v6e
topology: v6e:2x2x1
jax: 0.10.0
libtpu: 0.0.40
codegen_flags: <defaults>
</compile_context>

<pallas_src>
import functools

import jax
import jax.numpy as jnp
from jax.experimental import pallas as pl
from jax.experimental.pallas import tpu as pltpu

LANE = 128


def _round_up(n, m):
    return ((n + m - 1) // m) * m


def _silu_f32(v, approx):
    if approx:
        # exp and approximate reciprocal both issue to the EUP slot (idle otherwise).
        return v * pl.reciprocal(1.0 + jnp.exp(-v), approx=True)
    return v * jax.nn.sigmoid(v)


# ----------------------------------------------------------------------------
# Kernel: one batch tile of the 4-layer critic MLP (weights resident in VMEM).
# ----------------------------------------------------------------------------
def gsa_qvalue_kernel(x_ref,
                      w1_ref, b1_ref,
                      w2_ref, b2_ref,
                      w3_ref, b3_ref,
                      w4_ref, b4_ref,
                      o_ref, *, approx):
    w_dtype = w2_ref.dtype

    # Layer 1 -- x streamed at its true (unpadded) width; W1 K = true in_dim.
    h = jnp.dot(x_ref[...], w1_ref[...], preferred_element_type=jnp.float32)
    h = _silu_f32(h + b1_ref[...], approx)

    # Layer 2.
    h = jnp.dot(h.astype(w_dtype), w2_ref[...], preferred_element_type=jnp.float32)
    h = _silu_f32(h + b2_ref[...], approx)

    # Layer 3.
    h = jnp.dot(h.astype(w_dtype), w3_ref[...], preferred_element_type=jnp.float32)
    h = _silu_f32(h + b3_ref[...], approx)

    # Layer 4 -- true N = 1 (narrow output column, no 128-wide slab).
    q = jnp.dot(h.astype(w_dtype), w4_ref[...], preferred_element_type=jnp.float32)
    o_ref[...] = (q + b4_ref[...]).astype(o_ref.dtype)


# ----------------------------------------------------------------------------
# Parameter init (matches nn.Linear default init) and TPU-layout preparation.
# ----------------------------------------------------------------------------
def init_params(key, n_agents, obs_dim, act_dim, dtype=jnp.float32):
    d = obs_dim + act_dim
    dims = [n_agents * d, 2 * n_agents * d, n_agents * d, d, 1]
    params = []
    for i in range(4):
        key, kw, kb = jax.random.split(key, 3)
        bound = 1.0 / jnp.sqrt(jnp.float32(dims[i]))
        w = jax.random.uniform(kw, (dims[i], dims[i + 1]), dtype, -bound, bound)
        b = jax.random.uniform(kb, (1, dims[i + 1]), dtype, -bound, bound)
        params.append((w, b))
    return params


def prepare_params(params, compute_dtype=jnp.bfloat16):
    """Zero-pad hidden widths to 128 lanes (exact: padded cols give SiLU(0)=0 and
    hit zero weight rows).  W1's K stays the TRUE input width (x is streamed
    unpadded); W4's N stays 1 (true output column).  Weights are cast to the
    compute dtype; biases stay f32 (added post-accumulation)."""
    (w1, b1), (w2, b2), (w3, b3), (w4, b4) = params

    def pad_w(w, kp, np_):
        k, n = w.shape
        w = jnp.pad(w, ((0, kp - k), (0, np_ - n)))
        return w.astype(compute_dtype)

    def pad_b(b, np_):
        b = jnp.asarray(b, jnp.float32).reshape(1, -1)
        return jnp.pad(b, ((0, 0), (0, np_ - b.shape[1])))

    in_dim = w1.shape[0]
    h1p = _round_up(w1.shape[1], LANE)
    h2p = _round_up(w2.shape[1], LANE)
    h3p = _round_up(w3.shape[1], LANE)

    return dict(
        w1=pad_w(w1, in_dim, h1p), b1=pad_b(b1, h1p),
        w2=pad_w(w2, h1p, h2p),    b2=pad_b(b2, h2p),
        w3=pad_w(w3, h2p, h3p),    b3=pad_b(b3, h3p),
        w4=pad_w(w4, h3p, 1),      b4=jnp.asarray(b4, jnp.float32).reshape(1, 1),
        compute_dtype=compute_dtype,
    )


# ----------------------------------------------------------------------------
# Generation-aware tiling helpers.
# ----------------------------------------------------------------------------
def _vmem_budget_bytes():
    cap = 64 * 2**20  # conservative fallback (v7x: 64 MiB per TensorCore)
    try:
        info = pltpu.get_tpu_info()
        cap = int(getattr(info, "vmem_capacity_bytes", cap)) or cap
    except Exception:
        pass
    # Headroom for Mosaic internal scratch: ~48 MiB usable on v7x, ~96 on v5e/v6e.
    return min(int(cap * 0.75), 100 * 2**20)


def _derive_tile_b(in_dim, x_itemsize, hidden_cols, weight_bytes, budget):
    # Per-row VMEM: double-buffered x/out tiles + f32 activation temporaries
    # (accumulator + SiLU result + cast copy per hidden layer, ~12 B/col).
    per_row = 2 * (in_dim * x_itemsize + 4) + hidden_cols * 12
    avail = budget // 2 - 2 * weight_bytes          # 2x global headroom
    t = max(512, min(int(avail // per_row), 8192))
    return (t // 512) * 512


# ----------------------------------------------------------------------------
# Forward wrapper.
# ----------------------------------------------------------------------------
def gsa_qvalue_forward(observation, action, prep, *, tile_b=None, silu_approx=True):
    """observation: (B, na, obs_dim), action: (B, na, act_dim) -> (B, 1) f32."""
    B = observation.shape[0]
    cdt = prep["compute_dtype"]
    itemsize = jnp.dtype(cdt).itemsize
    pack = max(8, 32 // itemsize)       # sublane packing: f32->8, bf16->16, i8->32

    # Concatenate at the TRUE width -- no column padding, no padded HBM round trip.
    x = jnp.concatenate(
        [observation.reshape(B, -1), action.reshape(B, -1)], axis=1).astype(cdt)
    in_dim = x.shape[1]
    assert in_dim == prep["w1"].shape[0]

    h1p = prep["w1"].shape[1]
    h2p = prep["w2"].shape[1]
    h3p = prep["w3"].shape[1]

    weight_arrays = (prep["w1"], prep["b1"], prep["w2"], prep["b2"],
                     prep["w3"], prep["b3"], prep["w4"], prep["b4"])
    weight_bytes = sum(int(a.size) * a.dtype.itemsize for a in weight_arrays)

    budget = _vmem_budget_bytes()
    if tile_b is None:
        tile_b = _derive_tile_b(in_dim, itemsize, h1p + h2p + h3p,
                                weight_bytes, budget)
    tile_b = _round_up(int(tile_b), pack)

    # Batch padding: clamp the tile for tiny batches, otherwise pad B up to a
    # tile multiple (zero rows, sliced off after the call).
    B_pack = _round_up(B, pack)
    if B_pack <= tile_b:
        tile_b = B_pack
        B_pad = B_pack
    else:
        B_pad = _round_up(B, tile_b)
    if B_pad != B:
        x = jnp.pad(x, ((0, B_pad - B), (0, 0)))

    grid = (B_pad // tile_b,)

    # x block last dim == full array dim (true width), so the (8,128) rule holds
    # without padding; weights/biases are grid-invariant resident blocks.
    x_spec = pl.BlockSpec((tile_b, in_dim), lambda i: (i, 0))
    out_spec = pl.BlockSpec((tile_b, 1), lambda i: (i, 0))

    def resident(a):
        return pl.BlockSpec(a.shape, lambda i: (0, 0))

    in_specs = [x_spec] + [resident(a) for a in weight_arrays]

    # Cost estimate reflecting the true streamed bytes (post input/output slimming).
    flops = 2 * B_pad * (in_dim * h1p + h1p * h2p + h2p * h3p + h3p * 1)
    transcendentals = B_pad * (h1p + h2p + h3p)
    bytes_accessed = B_pad * in_dim * itemsize + weight_bytes + B_pad * 4

    # VMEM ask: resident weights (x2 for buffering) + double-buffered I/O tiles
    # + activation temporaries, 1.5x headroom, clamped to the generation budget.
    io_bytes = 2 * tile_b * (in_dim * itemsize + 4)
    act_bytes = tile_b * (h1p + h2p + h3p) * 12
    vmem_limit = int(min(max(int(1.5 * (2 * weight_bytes + io_bytes + act_bytes)),
                             16 * 2**20), budget))

    out = pl.pallas_call(
        functools.partial(gsa_qvalue_kernel, approx=silu_approx),
        out_shape=jax.ShapeDtypeStruct((B_pad, 1), jnp.float32),
        grid=grid,
        in_specs=in_specs,
        out_specs=out_spec,
        compiler_params=pltpu.CompilerParams(
            dimension_semantics=("parallel",),
            vmem_limit_bytes=vmem_limit),
        cost_estimate=pl.CostEstimate(
            flops=int(flops), transcendentals=int(transcendentals),
            bytes_accessed=int(bytes_accessed)),
    )(x, *weight_arrays)

    return out[:B]


# ----------------------------------------------------------------------------
# Pure-JAX reference (unpadded, matches the PyTorch module).
# ----------------------------------------------------------------------------
def gsa_qvalue_ref(observation, action, params):
    B = observation.shape[0]
    x = jnp.concatenate(
        [observation.reshape(B, -1), action.reshape(B, -1)], axis=1
    ).astype(jnp.float32)
    (w1, b1), (w2, b2), (w3, b3), (w4, b4) = params
    h = x @ w1 + b1; h = h * jax.nn.sigmoid(h)
    h = h @ w2 + b2; h = h * jax.nn.sigmoid(h)
    h = h @ w3 + b3; h = h * jax.nn.sigmoid(h)
    return h @ w4 + b4


if __name__ == "__main__":
    # Config consistent with the module: n_agents=4, obs_dim=6, act_dim=2
    #  -> d = 8, in = 32, hidden = [64, 32, 8, 1]
    n_agents, obs_dim, act_dim = 4, 6, 2
    key = jax.random.PRNGKey(0)
    k_obs, k_act, k_par, k_obs2, k_act2 = jax.random.split(key, 5)
    params = init_params(k_par, n_agents, obs_dim, act_dim)

    # --- small batch, exact-sigmoid f32 path: strict numerics vs. reference ---
    batch = 2
    observation = jax.random.normal(k_obs, (batch, n_agents, obs_dim), jnp.float32)
    action = jax.random.normal(k_act, (batch, n_agents, act_dim), jnp.float32)
    q_ref = gsa_qvalue_ref(observation, action, params)

    prep_f32 = prepare_params(params, compute_dtype=jnp.float32)
    q = gsa_qvalue_forward(observation, action, prep_f32, silu_approx=False)
    jax.block_until_ready(q)
    assert q.shape == (batch, 1)
    assert jnp.allclose(q, q_ref, atol=1e-5, rtol=1e-5)

    # --- default perf path: bf16 streamed input/weights + EUP approx-recip SiLU ---
    prep_bf16 = prepare_params(params)   # bf16 default
    q_fast = gsa_qvalue_forward(observation, action, prep_bf16)
    jax.block_until_ready(q_fast)
    assert q_fast.shape == (batch, 1)
    assert jnp.allclose(q_fast, q_ref, atol=1e-1, rtol=1e-1)

    # --- multi-tile grid path (B not a tile multiple), f32 exact sigmoid ---
    big_b = 1030
    obs_b = jax.random.normal(k_obs2, (big_b, n_agents, obs_dim), jnp.float32)
    act_b = jax.random.normal(k_act2, (big_b, n_agents, act_dim), jnp.float32)
    q_big = gsa_qvalue_forward(obs_b, act_b, prep_f32, tile_b=512, silu_approx=False)
    jax.block_until_ready(q_big)
    q_big_ref = gsa_qvalue_ref(obs_b, act_b, params)
    assert q_big.shape == (big_b, 1)
    assert jnp.allclose(q_big, q_big_ref, atol=1e-4, rtol=1e-4)

    print("KERNEL_OK")
</pallas_src>

<mosaic_0001>
module attributes {stable_mosaic.version = 11 : i64} {
  func.func @gsa_qvalue_kernel(%arg0: i32, %arg1: memref<8x32xf32, #tpu.memory_space<vmem>>, %arg2: memref<32x128xf32, #tpu.memory_space<vmem>>, %arg3: memref<1x128xf32, #tpu.memory_space<vmem>>, %arg4: memref<128x128xf32, #tpu.memory_space<vmem>>, %arg5: memref<1x128xf32, #tpu.memory_space<vmem>>, %arg6: memref<128x128xf32, #tpu.memory_space<vmem>>, %arg7: memref<1x128xf32, #tpu.memory_space<vmem>>, %arg8: memref<128x1xf32, #tpu.memory_space<vmem>>, %arg9: memref<1x1xf32, #tpu.memory_space<vmem>>, %arg10: memref<8x1xf32, #tpu.memory_space<vmem>>) attributes {dimension_semantics = [#tpu.dimension_semantics<parallel>], iteration_bounds = array<i64: 1>, scalar_prefetch = 0 : i64, scratch_operands = 0 : i64, tpu.core_type = #tpu.core_type<tc>, window_params = [{transform_indices = @transform_0, window_bounds = array<i64: 8, 32>}, {pipeline_mode = #tpu.pipeline_mode<synchronous>, transform_indices = @transform_1, window_bounds = array<i64: 32, 128>}, {pipeline_mode = #tpu.pipeline_mode<synchronous>, transform_indices = @transform_2, window_bounds = array<i64: 1, 128>}, {pipeline_mode = #tpu.pipeline_mode<synchronous>, transform_indices = @transform_3, window_bounds = array<i64: 128, 128>}, {pipeline_mode = #tpu.pipeline_mode<synchronous>, transform_indices = @transform_4, window_bounds = array<i64: 1, 128>}, {pipeline_mode = #tpu.pipeline_mode<synchronous>, transform_indices = @transform_5, window_bounds = array<i64: 128, 128>}, {pipeline_mode = #tpu.pipeline_mode<synchronous>, transform_indices = @transform_6, window_bounds = array<i64: 1, 128>}, {pipeline_mode = #tpu.pipeline_mode<synchronous>, transform_indices = @transform_7, window_bounds = array<i64: 128, 1>}, {pipeline_mode = #tpu.pipeline_mode<synchronous>, transform_indices = @transform_8, window_bounds = array<i64: 1, 1>}, {transform_indices = @transform_9, window_bounds = array<i64: 8, 1>}]} {
    %c0 = arith.constant 0 : index
    %c0_0 = arith.constant 0 : index
    %0 = vector.load %arg1[%c0, %c0_0] : memref<8x32xf32, #tpu.memory_space<vmem>>, vector<8x32xf32>
    %c0_1 = arith.constant 0 : index
    %c0_2 = arith.constant 0 : index
    %1 = vector.load %arg2[%c0_1, %c0_2] : memref<32x128xf32, #tpu.memory_space<vmem>>, vector<32x128xf32>
    %cst = arith.constant dense<0.000000e+00> : vector<8x128xf32>
    %2 = tpu.matmul %0, %1, %cst {dimension_numbers = #tpu.dot_dimension_numbers<[1], [0], [0], [1], [0, 0, 1, 1], [], []>} : vector<8x32xf32>, vector<32x128xf32>, vector<8x128xf32> -> vector<8x128xf32>
    %c0_3 = arith.constant 0 : index
    %c0_4 = arith.constant 0 : index
    %3 = vector.load %arg3[%c0_3, %c0_4] : memref<1x128xf32, #tpu.memory_space<vmem>>, vector<1x128xf32>
    %4 = vector.broadcast %3 : vector<1x128xf32> to vector<8x128xf32>
    %5 = arith.addf %2, %4 : vector<8x128xf32>
    %6 = arith.negf %5 : vector<8x128xf32>
    %7 = math.exp %6 : vector<8x128xf32>
    %cst_5 = arith.constant 1.000000e+00 : f32
    %8 = vector.broadcast %cst_5 : f32 to vector<8x128xf32>
    %9 = arith.addf %8, %7 : vector<8x128xf32>
    %10 = arith.divf %8, %9 : vector<8x128xf32>
    %11 = arith.mulf %5, %10 : vector<8x128xf32>
    %c0_6 = arith.constant 0 : index
    %c0_7 = arith.constant 0 : index
    %12 = vector.load %arg4[%c0_6, %c0_7] : memref<128x128xf32, #tpu.memory_space<vmem>>, vector<128x128xf32>
    %cst_8 = arith.constant dense<0.000000e+00> : vector<8x128xf32>
    %13 = tpu.matmul %11, %12, %cst_8 {dimension_numbers = #tpu.dot_dimension_numbers<[1], [0], [0], [1], [0, 0, 1, 1], [], []>} : vector<8x128xf32>, vector<128x128xf32>, vector<8x128xf32> -> vector<8x128xf32>
    %c0_9 = arith.constant 0 : index
    %c0_10 = arith.constant 0 : index
    %14 = vector.load %arg5[%c0_9, %c0_10] : memref<1x128xf32, #tpu.memory_space<vmem>>, vector<1x128xf32>
    %15 = vector.broadcast %14 : vector<1x128xf32> to vector<8x128xf32>
    %16 = arith.addf %13, %15 : vector<8x128xf32>
    %17 = arith.negf %16 : vector<8x128xf32>
    %18 = math.exp %17 : vector<8x128xf32>
    %cst_11 = arith.constant 1.000000e+00 : f32
    %19 = vector.broadcast %cst_11 : f32 to vector<8x128xf32>
    %20 = arith.addf %19, %18 : vector<8x128xf32>
    %21 = arith.divf %19, %20 : vector<8x128xf32>
    %22 = arith.mulf %16, %21 : vector<8x128xf32>
    %c0_12 = arith.constant 0 : index
    %c0_13 = arith.constant 0 : index
    %23 = vector.load %arg6[%c0_12, %c0_13] : memref<128x128xf32, #tpu.memory_space<vmem>>, vector<128x128xf32>
    %cst_14 = arith.constant dense<0.000000e+00> : vector<8x128xf32>
    %24 = tpu.matmul %22, %23, %cst_14 {dimension_numbers = #tpu.dot_dimension_numbers<[1], [0], [0], [1], [0, 0, 1, 1], [], []>} : vector<8x128xf32>, vector<128x128xf32>, vector<8x128xf32> -> vector<8x128xf32>
    %c0_15 = arith.constant 0 : index
    %c0_16 = arith.constant 0 : index
    %25 = vector.load %arg7[%c0_15, %c0_16] : memref<1x128xf32, #tpu.memory_space<vmem>>, vector<1x128xf32>
    %26 = vector.broadcast %25 : vector<1x128xf32> to vector<8x128xf32>
    %27 = arith.addf %24, %26 : vector<8x128xf32>
    %28 = arith.negf %27 : vector<8x128xf32>
    %29 = math.exp %28 : vector<8x128xf32>
    %cst_17 = arith.constant 1.000000e+00 : f32
    %30 = vector.broadcast %cst_17 : f32 to vector<8x128xf32>
    %31 = arith.addf %30, %29 : vector<8x128xf32>
    %32 = arith.divf %30, %31 : vector<8x128xf32>
    %33 = arith.mulf %27, %32 : vector<8x128xf32>
    %c0_18 = arith.constant 0 : index
    %c0_19 = arith.constant 0 : index
    %34 = vector.load %arg8[%c0_18, %c0_19] : memref<128x1xf32, #tpu.memory_space<vmem>>, vector<128x1xf32>
    %cst_20 = arith.constant dense<0.000000e+00> : vector<8x1xf32>
    %35 = tpu.matmul %33, %34, %cst_20 {dimension_numbers = #tpu.dot_dimension_numbers<[1], [0], [0], [1], [0, 0, 1, 1], [], []>} : vector<8x128xf32>, vector<128x1xf32>, vector<8x1xf32> -> vector<8x1xf32>
    %c0_21 = arith.constant 0 : index
    %c0_22 = arith.constant 0 : index
    %36 = vector.load %arg9[%c0_21, %c0_22] : memref<1x1xf32, #tpu.memory_space<vmem>>, vector<1x1xf32>
    %37 = vector.broadcast %36 : vector<1x1xf32> to vector<8x1xf32>
    %38 = arith.addf %35, %37 : vector<8x1xf32>
    %c0_23 = arith.constant 0 : index
    %c0_24 = arith.constant 0 : index
    %39 = vector.load %arg10[%c0_23, %c0_24] : memref<8x1xf32, #tpu.memory_space<vmem>>, vector<8x1xf32>
    tpu.vector_store %arg10[%c0_23, %c0_24], %38 {strides = array<i32>} : memref<8x1xf32, #tpu.memory_space<vmem>>, vector<8x1xf32>,
    return
  }
  func.func @transform_0(%arg0: i32) -> (i32, i32) {
    %c0_i32 = arith.constant 0 : i32
    %c0_i32_0 = arith.constant 0 : i32
    return %arg0, %c0_i32 : i32, i32
  }
  func.func @transform_1(%arg0: i32) -> (i32, i32) {
    %c0_i32 = arith.constant 0 : i32
    %c0_i32_0 = arith.constant 0 : i32
    %c0_i32_1 = arith.constant 0 : i32
    return %c0_i32, %c0_i32_0 : i32, i32
  }
  func.func @transform_2(%arg0: i32) -> (i32, i32) {
    %c0_i32 = arith.constant 0 : i32
    %c0_i32_0 = arith.constant 0 : i32
    %c0_i32_1 = arith.constant 0 : i32
    return %c0_i32, %c0_i32_0 : i32, i32
  }
  func.func @transform_3(%arg0: i32) -> (i32, i32) {
    %c0_i32 = arith.constant 0 : i32
    %c0_i32_0 = arith.constant 0 : i32
    %c0_i32_1 = arith.constant 0 : i32
    return %c0_i32, %c0_i32_0 : i32, i32
  }
  func.func @transform_4(%arg0: i32) -> (i32, i32) {
    %c0_i32 = arith.constant 0 : i32
    %c0_i32_0 = arith.constant 0 : i32
    %c0_i32_1 = arith.constant 0 : i32
    return %c0_i32, %c0_i32_0 : i32, i32
  }
  func.func @transform_5(%arg0: i32) -> (i32, i32) {
    %c0_i32 = arith.constant 0 : i32
    %c0_i32_0 = arith.constant 0 : i32
    %c0_i32_1 = arith.constant 0 : i32
    return %c0_i32, %c0_i32_0 : i32, i32
  }
  func.func @transform_6(%arg0: i32) -> (i32, i32) {
    %c0_i32 = arith.constant 0 : i32
    %c0_i32_0 = arith.constant 0 : i32
    %c0_i32_1 = arith.constant 0 : i32
    return %c0_i32, %c0_i32_0 : i32, i32
  }
  func.func @transform_7(%arg0: i32) -> (i32, i32) {
    %c0_i32 = arith.constant 0 : i32
    %c0_i32_0 = arith.constant 0 : i32
    %c0_i32_1 = arith.constant 0 : i32
    return %c0_i32, %c0_i32_0 : i32, i32
  }
  func.func @transform_8(%arg0: i32) -> (i32, i32) {
    %c0_i32 = arith.constant 0 : i32
    %c0_i32_0 = arith.constant 0 : i32
    %c0_i32_1 = arith.constant 0 : i32
    return %c0_i32, %c0_i32_0 : i32, i32
  }
  func.func @transform_9(%arg0: i32) -> (i32, i32) {
    %c0_i32 = arith.constant 0 : i32
    %c0_i32_0 = arith.constant 0 : i32
    return %arg0, %c0_i32 : i32, i32
  }
}

</mosaic_0001>

<llo_original>
// kernel: tpu_custom_call.1
$region0: #{tpu_custom_call.1}
  #allocation0 [shape = 'u32[]', space=smem, size = 0x4, offset = 0x4, fixed_abs, tag = 'smem constant byte address 0x4 - core index']
  #allocation1 [shape = 'u32[144,128]{1,0:T(1,128)}', space=vmem, size = 0x12000, scoped, tag = 'internal scratch']
  #allocation2 [shape = 'f32[1,1]{1,0:T(1,128)S(1)}', space=vmem, size = 0x200, scoped, tag = 'scoped memory for tpu_custom_call.1']
  %s0 = inlined_call_operand.vmem [shape: f32[8,32], index: 0, kind: input, shape index: {}]
  %s1 = inlined_call_operand.hbm [shape: f32[32,128], index: 1, kind: input, shape index: {}]
  %s2 = inlined_call_operand.hbm [shape: f32[1,128], index: 2, kind: input, shape index: {}]
  %s3 = inlined_call_operand.vmem [shape: f32[128,128], index: 3, kind: input, shape index: {}]
  %s4 = inlined_call_operand.vmem [shape: f32[1,128], index: 4, kind: input, shape index: {}]
  %s5 = inlined_call_operand.hbm [shape: f32[128,128], index: 5, kind: input, shape index: {}]
  %s6 = inlined_call_operand.vmem [shape: f32[1,128], index: 6, kind: input, shape index: {}]
  %s7 = inlined_call_operand.vmem [shape: f32[128,1], index: 7, kind: input, shape index: {}]
  %s8 = inlined_call_operand.<no memory space> [shape: f32[1,1], index: 8, kind: input, shape index: {}]
  %s9 = inlined_call_operand.vmem [shape: f32[8,1], index: 9, kind: output, shape index: {}]
  %s10 = sld [smem:[#allocation0]]
  $region58: #{tpu_custom_call.1} parent=0
    _
  %s12 = ssub.s32 1, %s10
  %s13 = scalar_select 0, %s12, %s10
  %v14 = vstv %s8
  %15 = vst [vmem:[#allocation2] sm:$0x1] %v14
  $region1: #{tpu_custom_call.1} parent=0
    #allocation3 [shape = 'u8[16384]{0}', space=vmem, size = 0x4000, scoped, tag = 'input window, operand 1, single buffered']
    #allocation4 [shape = 's32[1]{0}', space=sflag, size = 0x4, scoped, tag = 'scoped memory for tpu_custom_call.1']
    #allocation5 [shape = 'u8[512]{0}', space=vmem, size = 0x400, scoped, tag = 'input window, operand 2, single buffered']
    #allocation6 [shape = 's32[1]{0}', space=sflag, size = 0x4, scoped, tag = 'scoped memory for tpu_custom_call.1']
    #allocation7 [shape = 'u8[65536]{0}', space=vmem, size = 0x10000, scoped, tag = 'input window, operand 5, single buffered']
    %16 = vsyncpa [#allocation4], 0
    %17 = vsyncpa [#allocation6], 0
    // Predicated region
    $region2: #{tpu_custom_call.1} parent=1 // pred_check
      _
    $region3: #{tpu_custom_call.1} parent=1 // pred_check_branch
      %19 = sbr.rel (0) target = $region5
    $region4: #{tpu_custom_call.1} parent=1 // pred_region
      _
    $region5: #{tpu_custom_call.1} parent=1 // pred_fallthru
      _
    // Predicated region
    $region6: #{tpu_custom_call.1} parent=1 // pred_check
      _
    $region7: #{tpu_custom_call.1} parent=1 // pred_check_branch
      %21 = sbr.rel (0) target = $region9
    $region8: #{tpu_custom_call.1} parent=1 // pred_region
      %s23 = ssub.s32 512, 512
      %24 = vsyncadd [#allocation4], %s23
      %s25 = sshll.u32 [#allocation3], 4
      %s26 = int_to_ptr.vmem [resolvable:$true] %s25
      %31 = dma.hbm_to_vmem [thread:$0]  %s1, 512, %s26, [#allocation4], 128, 128, 8
    $region9: #{tpu_custom_call.1} parent=1 // pred_fallthru
      _
    // Predicated region
    $region10: #{tpu_custom_call.1} parent=1 // pred_check
      _
    $region11: #{tpu_custom_call.1} parent=1 // pred_check_branch
      %33 = sbr.rel (0) target = $region13
    $region12: #{tpu_custom_call.1} parent=1 // pred_region
      %s35 = ssub.s32 16, 16
      %36 = vsyncadd [#allocation6], %s35
      %s38 = sshll.u32 [#allocation5], 4
      %s39 = int_to_ptr.vmem [resolvable:$true] %s38
      %41 = dma.hbm_to_vmem [thread:$0]  %s2, 16, %s39, [#allocation6]
    $region13: #{tpu_custom_call.1} parent=1 // pred_fallthru
      _
    // Predicated region
    $region14: #{tpu_custom_call.1} parent=1 // pred_check
      _
    $region15: #{tpu_custom_call.1} parent=1 // pred_check_branch
      %43 = sbr.rel (0) target = $region17
    $region16: #{tpu_custom_call.1} parent=1 // pred_region
      _
    $region17: #{tpu_custom_call.1} parent=1 // pred_fallthru
      _
    // Predicated region
    $region18: #{tpu_custom_call.1} parent=1 // pred_check
      _
    $region19: #{tpu_custom_call.1} parent=1 // pred_check_branch
      %45 = sbr.rel (0) target = $region21
    $region20: #{tpu_custom_call.1} parent=1 // pred_region
      _
    $region21: #{tpu_custom_call.1} parent=1 // pred_fallthru
      _
    // Predicated region
    $region22: #{tpu_custom_call.1} parent=1 // pred_check
      _
    $region23: #{tpu_custom_call.1} parent=1 // pred_check_branch
      %47 = sbr.rel (0) target = $region25
    $region24: #{tpu_custom_call.1} parent=1 // pred_region
      %s49 = ssub.s32 2048, 2048
      %50 = vsyncadd [#allocation6], %s49
      %s51 = sshll.u32 [#allocation7], 4
      %s52 = int_to_ptr.vmem [resolvable:$true] %s51
      %57 = dma.hbm_to_vmem [thread:$0]  %s5, 2048, %s52, [#allocation6], 128, 128, 8
    $region25: #{tpu_custom_call.1} parent=1 // pred_fallthru
      _
    // Predicated region
    $region26: #{tpu_custom_call.1} parent=1 // pred_check
      _
    $region27: #{tpu_custom_call.1} parent=1 // pred_check_branch
      %59 = sbr.rel (0) target = $region29
    $region28: #{tpu_custom_call.1} parent=1 // pred_region
      _
    $region29: #{tpu_custom_call.1} parent=1 // pred_fallthru
      _
    // Predicated region
    $region30: #{tpu_custom_call.1} parent=1 // pred_check
      _
    $region31: #{tpu_custom_call.1} parent=1 // pred_check_branch
      %61 = sbr.rel (0) target = $region33
    $region32: #{tpu_custom_call.1} parent=1 // pred_region
      _
    $region33: #{tpu_custom_call.1} parent=1 // pred_fallthru
      _
    // Predicated region
    $region34: #{tpu_custom_call.1} parent=1 // pred_check
      _
    $region35: #{tpu_custom_call.1} parent=1 // pred_check_branch
      %63 = sbr.rel (0) target = $region37
    $region36: #{tpu_custom_call.1} parent=1 // pred_region
      _
    $region37: #{tpu_custom_call.1} parent=1 // pred_fallthru
      _
    // Predicated region
    $region38: #{tpu_custom_call.1} parent=1 // pred_check
      _
    $region39: #{tpu_custom_call.1} parent=1 // pred_check_branch
      %65 = sbr.rel (0) target = $region41
    $region40: #{tpu_custom_call.1} parent=1 // pred_region
      %66 = dma.done [#allocation4], 512
    $region41: #{tpu_custom_call.1} parent=1 // pred_fallthru
      _
    // Predicated region
    $region42: #{tpu_custom_call.1} parent=1 // pred_check
      _
    $region43: #{tpu_custom_call.1} parent=1 // pred_check_branch
      %68 = sbr.rel (0) target = $region45
    $region44: #{tpu_custom_call.1} parent=1 // pred_region
      %69 = dma.done [#allocation6], 16
    $region45: #{tpu_custom_call.1} parent=1 // pred_fallthru
      _
    // Predicated region
    $region46: #{tpu_custom_call.1} parent=1 // pred_check
      _
    $region47: #{tpu_custom_call.1} parent=1 // pred_check_branch
      %71 = sbr.rel (0) target = $region49
    $region48: #{tpu_custom_call.1} parent=1 // pred_region
      %72 = dma.done [#allocation6], 2048
    $region49: #{tpu_custom_call.1} parent=1 // pred_fallthru
      _
    %v73 = vld [vmem:[%s0] sm:$0xff]
    %v74 = vld [vmem:[#allocation3] sm:$0xff]
    %v75 = vld [vmem:[#allocation3 + $0x8] sm:$0xff]
    %v76 = vld [vmem:[#allocation3 + $0x10] sm:$0xff]
    %v77 = vld [vmem:[#allocation3 + $0x18] sm:$0xff]
    %v78 = vld [vmem:[#allocation5] sm:$0x1]
    %v80 = vlaneseq
    %v81 = vshrl.u32 %v80, 7
    %v82 = vsub.s32 0, %v81
    %v83 = vrot.slane %v78, %v82
    %vm85 = vcmask 261120
    %v87 = vsel %vm85, %v73, 0
    %89 = vmatprep.subr.mxu0 0.0
    %90 = vmatpush1.msra.mxu0 0.0
    %91 = vmatprep.subr.mxu0 0.0
    %92 = vmatpush1.msra.mxu0 0.0
    %93 = vmatprep.subr.mxu0 0.0
    %94 = vmatpush1.msra.mxu0 0.0
    %95 = vmatprep.subr.mxu0 0.0
    %96 = vmatpush1.msra.mxu0 0.0
    %97 = vmatprep.subr.mxu0 0.0
    %98 = vmatpush1.msra.mxu0 0.0
    %99 = vmatprep.subr.mxu0 0.0
    %100 = vmatpush1.msra.mxu0 0.0
    %101 = vmatprep.subr.mxu0 0.0
    %102 = vmatpush1.msra.mxu0 0.0
    %103 = vmatprep.subr.mxu0 0.0
    %104 = vmatpush1.msra.mxu0 0.0
    %105 = vmatprep.subr.mxu0 0.0
    %106 = vmatpush1.msra.mxu0 0.0
    %107 = vmatprep.subr.mxu0 0.0
    %108 = vmatpush1.msra.mxu0 0.0
    %109 = vmatprep.subr.mxu0 0.0
    %110 = vmatpush1.msra.mxu0 0.0
    %111 = vmatprep.subr.mxu0 0.0
    %112 = vmatpush1.msra.mxu0 0.0
    %113 = vmatprep.subr.mxu0 0.0
    %114 = vmatpush1.msra.mxu0 %v77
    %115 = vmatprep.subr.mxu0 0.0
    %116 = vmatpush1.msra.mxu0 %v76
    %117 = vmatprep.subr.mxu0 0.0
    %118 = vmatpush1.msra.mxu0 %v75
    %119 = vmatprep.subr.mxu0 0.0
    %120 = vmatpush1.msra.mxu0 %v74
    %121 = vmatprep.subr.mxu0 0.0
    %122 = vmatpush2.msra.mxu0 0.0
    %123 = vmatprep.subr.mxu0 0.0
    %124 = vmatpush2.msra.mxu0 0.0
    %125 = vmatprep.subr.mxu0 0.0
    %126 = vmatpush2.msra.mxu0 0.0
    %127 = vmatprep.subr.mxu0 0.0
    %128 = vmatpush2.msra.mxu0 0.0
    %129 = vmatprep.subr.mxu0 0.0
    %130 = vmatpush2.msra.mxu0 0.0
    %131 = vmatprep.subr.mxu0 0.0
    %132 = vmatpush2.msra.mxu0 0.0
    %133 = vmatprep.subr.mxu0 0.0
    %134 = vmatpush2.msra.mxu0 0.0
    %135 = vmatprep.subr.mxu0 0.0
    %136 = vmatpush2.msra.mxu0 0.0
    %137 = vmatprep.subr.mxu0 0.0
    %138 = vmatpush2.msra.mxu0 0.0
    %139 = vmatprep.subr.mxu0 0.0
    %140 = vmatpush2.msra.mxu0 0.0
    %141 = vmatprep.subr.mxu0 0.0
    %142 = vmatpush2.msra.mxu0 0.0
    %143 = vmatprep.subr.mxu0 0.0
    %144 = vmatpush2.msra.mxu0 0.0
    %145 = vmatprep.subr.mxu0 0.0
    %146 = vmatpush2.msra.mxu0 0.0
    %147 = vmatprep.subr.mxu0 0.0
    %148 = vmatpush2.msra.mxu0 0.0
    %149 = vmatprep.subr.mxu0 0.0
    %150 = vmatpush2.msra.mxu0 0.0
    %151 = vmatprep.subr.mxu0 0.0
    %152 = vmatpush2.msra.mxu0 0.0
    %153 = vmatprep.mubr.f32.mxu0 0.0
    %154 = vmatmul.mubr.f32.gmra.mxu0 %v87
    %v155 = vpop.f32.mrf.mxu0
    %v156 = vadd.f32 %v83, %v155
    %v157 = vpop.f32.mrf.mxu0
    %158 = vdwg.mxu0
    %v159 = vxor.u32 %v156, 2147483648
    %v160 = vmul.f32 %v159, 1.442695
    %v161 = vpow.pop %v160
    %v162 = vadd.f32 %v161, 1.0
    %v163 = vrcp.pop %v162
    %v164 = vmul.f32 1.0, %v163
    %v165 = vmul.f32 %v156, %v164
    %v166 = vld [vmem:[%s3] sm:$0xff]
    %v167 = vld [vmem:[%s3 + $0x8] sm:$0xff]
    %v168 = vld [vmem:[%s3 + $0x10] sm:$0xff]
    %v169 = vld [vmem:[%s3 + $0x18] sm:$0xff]
    %v170 = vld [vmem:[%s3 + $0x20] sm:$0xff]
    %v171 = vld [vmem:[%s3 + $0x28] sm:$0xff]
    %v172 = vld [vmem:[%s3 + $0x30] sm:$0xff]
    %v173 = vld [vmem:[%s3 + $0x38] sm:$0xff]
    %v174 = vld [vmem:[%s3 + $0x40] sm:$0xff]
    %v175 = vld [vmem:[%s3 + $0x48] sm:$0xff]
    %v176 = vld [vmem:[%s3 + $0x50] sm:$0xff]
    %v177 = vld [vmem:[%s3 + $0x58] sm:$0xff]
    %v178 = vld [vmem:[%s3 + $0x60] sm:$0xff]
    %v179 = vld [vmem:[%s3 + $0x68] sm:$0xff]
    %v180 = vld [vmem:[%s3 + $0x70] sm:$0xff]
    %v181 = vld [vmem:[%s3 + $0x78] sm:$0xff]
    %v182 = vld [vmem:[%s4] sm:$0x1]
    %v184 = vlaneseq
    %v185 = vshrl.u32 %v184, 7
    %v186 = vsub.s32 0, %v185
    %v187 = vrot.slane %v182, %v186
    %189 = vmatprep.subr.mxu0 0.0
    %190 = vmatpush1.msra.mxu0 %v181
    %191 = vmatprep.subr.mxu0 0.0
    %192 = vmatpush1.msra.mxu0 %v180
    %193 = vmatprep.subr.mxu0 0.0
    %194 = vmatpush1.msra.mxu0 %v179
    %195 = vmatprep.subr.mxu0 0.0
    %196 = vmatpush1.msra.mxu0 %v178
    %197 = vmatprep.subr.mxu0 0.0
    %198 = vmatpush1.msra.mxu0 %v177
    %199 = vmatprep.subr.mxu0 0.0
    %200 = vmatpush1.msra.mxu0 %v176
    %201 = vmatprep.subr.mxu0 0.0
    %202 = vmatpush1.msra.mxu0 %v175
    %203 = vmatprep.subr.mxu0 0.0
    %204 = vmatpush1.msra.mxu0 %v174
    %205 = vmatprep.subr.mxu0 0.0
    %206 = vmatpush1.msra.mxu0 %v173
    %207 = vmatprep.subr.mxu0 0.0
    %208 = vmatpush1.msra.mxu0 %v172
    %209 = vmatprep.subr.mxu0 0.0
    %210 = vmatpush1.msra.mxu0 %v171
    %211 = vmatprep.subr.mxu0 0.0
    %212 = vmatpush1.msra.mxu0 %v170
    %213 = vmatprep.subr.mxu0 0.0
    %214 = vmatpush1.msra.mxu0 %v169
    %215 = vmatprep.subr.mxu0 0.0
    %216 = vmatpush1.msra.mxu0 %v168
    %217 = vmatprep.subr.mxu0 0.0
    %218 = vmatpush1.msra.mxu0 %v167
    %219 = vmatprep.subr.mxu0 0.0
    %220 = vmatpush1.msra.mxu0 %v166
    %221 = vmatprep.subr.mxu0 0.0
    %222 = vmatpush2.msra.mxu0 0.0
    %223 = vmatprep.subr.mxu0 0.0
    %224 = vmatpush2.msra.mxu0 0.0
    %225 = vmatprep.subr.mxu0 0.0
    %226 = vmatpush2.msra.mxu0 0.0
    %227 = vmatprep.subr.mxu0 0.0
    %228 = vmatpush2.msra.mxu0 0.0
    %229 = vmatprep.subr.mxu0 0.0
    %230 = vmatpush2.msra.mxu0 0.0
    %231 = vmatprep.subr.mxu0 0.0
    %232 = vmatpush2.msra.mxu0 0.0
    %233 = vmatprep.subr.mxu0 0.0
    %234 = vmatpush2.msra.mxu0 0.0
    %235 = vmatprep.subr.mxu0 0.0
    %236 = vmatpush2.msra.mxu0 0.0
    %237 = vmatprep.subr.mxu0 0.0
    %238 = vmatpush2.msra.mxu0 0.0
    %239 = vmatprep.subr.mxu0 0.0
    %240 = vmatpush2.msra.mxu0 0.0
    %241 = vmatprep.subr.mxu0 0.0
    %242 = vmatpush2.msra.mxu0 0.0
    %243 = vmatprep.subr.mxu0 0.0
    %244 = vmatpush2.msra.mxu0 0.0
    %245 = vmatprep.subr.mxu0 0.0
    %246 = vmatpush2.msra.mxu0 0.0
    %247 = vmatprep.subr.mxu0 0.0
    %248 = vmatpush2.msra.mxu0 0.0
    %249 = vmatprep.subr.mxu0 0.0
    %250 = vmatpush2.msra.mxu0 0.0
    %251 = vmatprep.subr.mxu0 0.0
    %252 = vmatpush2.msra.mxu0 0.0
    %253 = vmatprep.mubr.f32.mxu0 0.0
    %254 = vmatmul.mubr.f32.gmra.mxu0 %v165
    %v255 = vpop.f32.mrf.mxu0
    %v256 = vadd.f32 %v187, %v255
    %v257 = vpop.f32.mrf.mxu0
    %258 = vdwg.mxu0
    %v259 = vxor.u32 %v256, 2147483648
    %v260 = vmul.f32 %v259, 1.442695
    %v261 = vpow.pop %v260
    %v262 = vadd.f32 %v261, 1.0
    %v263 = vrcp.pop %v262
    %v264 = vmul.f32 1.0, %v263
    %v265 = vmul.f32 %v256, %v264
    %v266 = vld [vmem:[#allocation7] sm:$0xff]
    %v267 = vld [vmem:[#allocation7 + $0x8] sm:$0xff]
    %v268 = vld [vmem:[#allocation7 + $0x10] sm:$0xff]
    %v269 = vld [vmem:[#allocation7 + $0x18] sm:$0xff]
    %v270 = vld [vmem:[#allocation7 + $0x20] sm:$0xff]
    %v271 = vld [vmem:[#allocation7 + $0x28] sm:$0xff]
    %v272 = vld [vmem:[#allocation7 + $0x30] sm:$0xff]
    %v273 = vld [vmem:[#allocation7 + $0x38] sm:$0xff]
    %v274 = vld [vmem:[#allocation7 + $0x40] sm:$0xff]
    %v275 = vld [vmem:[#allocation7 + $0x48] sm:$0xff]
    %v276 = vld [vmem:[#allocation7 + $0x50] sm:$0xff]
    %v277 = vld [vmem:[#allocation7 + $0x58] sm:$0xff]
    %v278 = vld [vmem:[#allocation7 + $0x60] sm:$0xff]
    %v279 = vld [vmem:[#allocation7 + $0x68] sm:$0xff]
    %v280 = vld [vmem:[#allocation7 + $0x70] sm:$0xff]
    %v281 = vld [vmem:[#allocation7 + $0x78] sm:$0xff]
    %v282 = vld [vmem:[%s6] sm:$0x1]
    %v284 = vlaneseq
    %v285 = vshrl.u32 %v284, 7
    %v286 = vsub.s32 0, %v285
    %v287 = vrot.slane %v282, %v286
    %289 = vmatprep.subr.mxu0 0.0
    %290 = vmatpush1.msra.mxu0 %v281
    %291 = vmatprep.subr.mxu0 0.0
    %292 = vmatpush1.msra.mxu0 %v280
    %293 = vmatprep.subr.mxu0 0.0
    %294 = vmatpush1.msra.mxu0 %v279
    %295 = vmatprep.subr.mxu0 0.0
    %296 = vmatpush1.msra.mxu0 %v278
    %297 = vmatprep.subr.mxu0 0.0
    %298 = vmatpush1.msra.mxu0 %v277
    %299 = vmatprep.subr.mxu0 0.0
    %300 = vmatpush1.msra.mxu0 %v276
    %301 = vmatprep.subr.mxu0 0.0
    %302 = vmatpush1.msra.mxu0 %v275
    %303 = vmatprep.subr.mxu0 0.0
    %304 = vmatpush1.msra.mxu0 %v274
    %305 = vmatprep.subr.mxu0 0.0
    %306 = vmatpush1.msra.mxu0 %v273
    %307 = vmatprep.subr.mxu0 0.0
    %308 = vmatpush1.msra.mxu0 %v272
    %309 = vmatprep.subr.mxu0 0.0
    %310 = vmatpush1.msra.mxu0 %v271
    %311 = vmatprep.subr.mxu0 0.0
    %312 = vmatpush1.msra.mxu0 %v270
    %313 = vmatprep.subr.mxu0 0.0
    %314 = vmatpush1.msra.mxu0 %v269
    %315 = vmatprep.subr.mxu0 0.0
    %316 = vmatpush1.msra.mxu0 %v268
    %317 = vmatprep.subr.mxu0 0.0
    %318 = vmatpush1.msra.mxu0 %v267
    %319 = vmatprep.subr.mxu0 0.0
    %320 = vmatpush1.msra.mxu0 %v266
    %321 = vmatprep.subr.mxu0 0.0
    %322 = vmatpush2.msra.mxu0 0.0
    %323 = vmatprep.subr.mxu0 0.0
    %324 = vmatpush2.msra.mxu0 0.0
    %325 = vmatprep.subr.mxu0 0.0
    %326 = vmatpush2.msra.mxu0 0.0
    %327 = vmatprep.subr.mxu0 0.0
    %328 = vmatpush2.msra.mxu0 0.0
    %329 = vmatprep.subr.mxu0 0.0
    %330 = vmatpush2.msra.mxu0 0.0
    %331 = vmatprep.subr.mxu0 0.0
    %332 = vmatpush2.msra.mxu0 0.0
    %333 = vmatprep.subr.mxu0 0.0
    %334 = vmatpush2.msra.mxu0 0.0
    %335 = vmatprep.subr.mxu0 0.0
    %336 = vmatpush2.msra.mxu0 0.0
    %337 = vmatprep.subr.mxu0 0.0
    %338 = vmatpush2.msra.mxu0 0.0
    %339 = vmatprep.subr.mxu0 0.0
    %340 = vmatpush2.msra.mxu0 0.0
    %341 = vmatprep.subr.mxu0 0.0
    %342 = vmatpush2.msra.mxu0 0.0
    %343 = vmatprep.subr.mxu0 0.0
    %344 = vmatpush2.msra.mxu0 0.0
    %345 = vmatprep.subr.mxu0 0.0
    %346 = vmatpush2.msra.mxu0 0.0
    %347 = vmatprep.subr.mxu0 0.0
    %348 = vmatpush2.msra.mxu0 0.0
    %349 = vmatprep.subr.mxu0 0.0
    %350 = vmatpush2.msra.mxu0 0.0
    %351 = vmatprep.subr.mxu0 0.0
    %352 = vmatpush2.msra.mxu0 0.0
    %353 = vmatprep.mubr.f32.mxu0 0.0
    %354 = vmatmul.mubr.f32.gmra.mxu0 %v265
    %v355 = vpop.f32.mrf.mxu0
    %v356 = vadd.f32 %v287, %v355
    %v357 = vpop.f32.mrf.mxu0
    %358 = vdwg.mxu0
    %v359 = vxor.u32 %v356, 2147483648
    %v360 = vmul.f32 %v359, 1.442695
    %v361 = vpow.pop %v360
    %v362 = vadd.f32 %v361, 1.0
    %v363 = vrcp.pop %v362
    %v364 = vmul.f32 1.0, %v363
    %v365 = vmul.f32 %v356, %v364
    %v366 = vld [vmem:[%s7] sm:$0xff]
    %v367 = vld [vmem:[%s7 + $0x8] sm:$0xff]
    %v368 = vld [vmem:[%s7 + $0x10] sm:$0xff]
    %v369 = vld [vmem:[%s7 + $0x18] sm:$0xff]
    %v370 = vld [vmem:[%s7 + $0x20] sm:$0xff]
    %v371 = vld [vmem:[%s7 + $0x28] sm:$0xff]
    %v372 = vld [vmem:[%s7 + $0x30] sm:$0xff]
    %v373 = vld [vmem:[%s7 + $0x38] sm:$0xff]
    %v374 = vld [vmem:[%s7 + $0x40] sm:$0xff]
    %v375 = vld [vmem:[%s7 + $0x48] sm:$0xff]
    %v376 = vld [vmem:[%s7 + $0x50] sm:$0xff]
    %v377 = vld [vmem:[%s7 + $0x58] sm:$0xff]
    %v378 = vld [vmem:[%s7 + $0x60] sm:$0xff]
    %v379 = vld [vmem:[%s7 + $0x68] sm:$0xff]
    %v380 = vld [vmem:[%s7 + $0x70] sm:$0xff]
    %v381 = vld [vmem:[%s7 + $0x78] sm:$0xff]
    %v382 = vld [vmem:[#allocation2] sm:$0x1]
    %v384 = vlaneseq
    %v385 = vshrl.u32 %v384, 7
    %v386 = vsub.s32 0, %v385
    %v387 = vrot.slane %v382, %v386
    %389 = vmatprep.subr.mxu0 0.0
    %390 = vmatpush1.msra.mxu0 %v381
    %391 = vmatprep.subr.mxu0 0.0
    %392 = vmatpush1.msra.mxu0 %v380
    %393 = vmatprep.subr.mxu0 0.0
    %394 = vmatpush1.msra.mxu0 %v379
    %395 = vmatprep.subr.mxu0 0.0
    %396 = vmatpush1.msra.mxu0 %v378
    %397 = vmatprep.subr.mxu0 0.0
    %398 = vmatpush1.msra.mxu0 %v377
    %399 = vmatprep.subr.mxu0 0.0
    %400 = vmatpush1.msra.mxu0 %v376
    %401 = vmatprep.subr.mxu0 0.0
    %402 = vmatpush1.msra.mxu0 %v375
    %403 = vmatprep.subr.mxu0 0.0
    %404 = vmatpush1.msra.mxu0 %v374
    %405 = vmatprep.subr.mxu0 0.0
    %406 = vmatpush1.msra.mxu0 %v373
    %407 = vmatprep.subr.mxu0 0.0
    %408 = vmatpush1.msra.mxu0 %v372
    %409 = vmatprep.subr.mxu0 0.0
    %410 = vmatpush1.msra.mxu0 %v371
    %411 = vmatprep.subr.mxu0 0.0
    %412 = vmatpush1.msra.mxu0 %v370
    %413 = vmatprep.subr.mxu0 0.0
    %414 = vmatpush1.msra.mxu0 %v369
    %415 = vmatprep.subr.mxu0 0.0
    %416 = vmatpush1.msra.mxu0 %v368
    %417 = vmatprep.subr.mxu0 0.0
    %418 = vmatpush1.msra.mxu0 %v367
    %419 = vmatprep.subr.mxu0 0.0
    %420 = vmatpush1.msra.mxu0 %v366
    %421 = vmatprep.subr.mxu0 0.0
    %422 = vmatpush2.msra.mxu0 0.0
    %423 = vmatprep.subr.mxu0 0.0
    %424 = vmatpush2.msra.mxu0 0.0
    %425 = vmatprep.subr.mxu0 0.0
    %426 = vmatpush2.msra.mxu0 0.0
    %427 = vmatprep.subr.mxu0 0.0
    %428 = vmatpush2.msra.mxu0 0.0
    %429 = vmatprep.subr.mxu0 0.0
    %430 = vmatpush2.msra.mxu0 0.0
    %431 = vmatprep.subr.mxu0 0.0
    %432 = vmatpush2.msra.mxu0 0.0
    %433 = vmatprep.subr.mxu0 0.0
    %434 = vmatpush2.msra.mxu0 0.0
    %435 = vmatprep.subr.mxu0 0.0
    %436 = vmatpush2.msra.mxu0 0.0
    %437 = vmatprep.subr.mxu0 0.0
    %438 = vmatpush2.msra.mxu0 0.0
    %439 = vmatprep.subr.mxu0 0.0
    %440 = vmatpush2.msra.mxu0 0.0
    %441 = vmatprep.subr.mxu0 0.0
    %442 = vmatpush2.msra.mxu0 0.0
    %443 = vmatprep.subr.mxu0 0.0
    %444 = vmatpush2.msra.mxu0 0.0
    %445 = vmatprep.subr.mxu0 0.0
    %446 = vmatpush2.msra.mxu0 0.0
    %447 = vmatprep.subr.mxu0 0.0
    %448 = vmatpush2.msra.mxu0 0.0
    %449 = vmatprep.subr.mxu0 0.0
    %450 = vmatpush2.msra.mxu0 0.0
    %451 = vmatprep.subr.mxu0 0.0
    %452 = vmatpush2.msra.mxu0 0.0
    %453 = vmatprep.mubr.f32.mxu0 0.0
    %454 = vmatmul.mubr.f32.gmra.mxu0 %v365
    %v455 = vpop.f32.mrf.mxu0
    %v456 = vadd.f32 %v387, %v455
    %v457 = vpop.f32.mrf.mxu0
    %458 = vdwg.mxu0
    %vm459 = vcmask 7168
    %460 = vst.msk [vmem:[%s9] sm:$0xff] %vm459, %v456
    // Predicated region
    $region50: #{tpu_custom_call.1} parent=1 // pred_check
      _
    $region51: #{tpu_custom_call.1} parent=1 // pred_check_branch
      %462 = sbr.rel (0) target = $region53
    $region52: #{tpu_custom_call.1} parent=1 // pred_region
      _
    $region53: #{tpu_custom_call.1} parent=1 // pred_fallthru
      _
    // Predicated region
    $region54: #{tpu_custom_call.1} parent=1 // pred_check
      _
    $region55: #{tpu_custom_call.1} parent=1 // pred_check_branch
      %464 = sbr.rel (0) target = $region57
    $region56: #{tpu_custom_call.1} parent=1 // pred_region
      _
    $region57: #{tpu_custom_call.1} parent=1 // pred_fallthru
      _
    %465 = vsyncpa [#allocation4], 1
    %466 = vsyncpa [#allocation6], 1

</llo_original>
